<compile_context>
chip_gen: v7x
topology: tpu7x:2x2x1
jax: 0.10.0
libtpu: 0.0.40
codegen_flags: <defaults>
</compile_context>

<pallas_src>
import math

import numpy as np
import jax
import jax.numpy as jnp
from jax import lax
from jax.experimental import pallas as pl
from jax.experimental.pallas import tpu as pltpu
from jax.scipy.special import gammaln

_LANES = 128            # lane-axis width of the flattened slab
_MAX_TILE_ROWS = 4096   # 4096 * 128 * 4 B = 2 MiB per input block (double-buffered)
_HALF_LOG_TWO_PI = 0.9189385332046727


# ---- lgamma(k+1): Stirling main term + fitted Binet correction -----------------
def _fit_binet_poly(max_degree=14, target_err=5e-6):
    """Fit mu(k+1) = lgamma(k+1) - [(k+.5)log(k+1) - (k+1) + .5 log(2pi)].

    mu (the Binet function) is tiny (0.0811 at k=0, -> 0 as k -> inf) and smooth
    in w = 1/(k+2); fit it as a polynomial in s = 4w - 1 on [-1, 1].  Fit in
    float64 (Chebyshev least squares at Gauss nodes), then validate the exact
    float32 Horner evaluation the kernel performs against math.lgamma and pick
    the smallest degree meeting `target_err` (else the best found).
    """
    def binet(k):
        k = np.asarray(k, dtype=np.float64)
        lg = np.array([math.lgamma(x + 1.0) for x in k.ravel()]).reshape(k.shape)
        return lg - ((k + 0.5) * np.log(k + 1.0) - (k + 1.0) + _HALF_LOG_TWO_PI)

    # Fit nodes: Chebyshev-Gauss points in s (cluster at both ends; never hit
    # s = -1, i.e. k = inf).
    m = 1024
    s_fit = np.cos((2.0 * np.arange(m) + 1.0) * np.pi / (2.0 * m))
    k_fit = 1.0 / ((s_fit + 1.0) * 0.25) - 2.0
    mu_fit = binet(k_fit)

    # Validation nodes: dense small counts + log-spaced large counts.
    k_val = np.concatenate([np.linspace(0.0, 64.0, 2049),
                            np.geomspace(64.0, 1.0e6, 2048)])
    mu_val = binet(k_val)
    s_val32 = (4.0 / (k_val + 2.0) - 1.0).astype(np.float32)

    best_err, best_coefs = None, None
    for deg in range(6, max_degree + 1):
        cheb = np.polynomial.chebyshev.chebfit(s_fit, mu_fit, deg)
        coefs = np.polynomial.chebyshev.cheb2poly(cheb)[::-1]      # high -> low
        acc = np.float32(coefs[0]) * s_val32 + np.float32(coefs[1])
        for c in coefs[2:]:
            acc = acc * s_val32 + np.float32(c)
        err = float(np.max(np.abs(acc.astype(np.float64) - mu_val)))
        if best_err is None or err < best_err:
            best_err, best_coefs = err, tuple(float(c) for c in coefs)
        if err <= target_err:
            break
    return best_coefs


_MU_COEFS = _fit_binet_poly()


def _horner(x, coeffs):
    acc = coeffs[0] * x + coeffs[1]
    for c in coeffs[2:]:
        acc = acc * x + c
    return acc


def _lgamma_kp1(k):
    """lgamma(k + 1) for k >= 0 (f32): 1 EUP log + 1 EUP approx-rcp + short Horner."""
    x = k + 2.0
    w = pl.reciprocal(x, approx=True)
    w = w * (2.0 - x * w)                      # one Newton step on the VPU
    mu = _horner(4.0 * w - 1.0, _MU_COEFS)
    kp1 = k + 1.0
    return (k + 0.5) * jnp.log(kp1) - kp1 + _HALF_LOG_TWO_PI + mu


# ---- Pallas kernel --------------------------------------------------------------
def _make_kernel(dt, tile_rows, sub, n_valid, needs_mask):
    dt = float(dt)

    def kernel(k_ref, lam_ref, out_ref):
        k = k_ref[...].astype(jnp.float32)
        lam = lam_ref[...].astype(jnp.float32)
        lam_dt = lam * dt if dt != 1.0 else lam

        # NOTE: like the PyTorch reference, lam*dt == 0 with k == 0 yields NaN.
        ll = k * jnp.log(lam_dt) - lam_dt - _lgamma_kp1(k)

        def store_partial(vals):
            if tile_rows == sub:
                out_ref[0] = vals
            else:
                # (tile_rows,128) -> (tile_rows//8, 8, 128) -> VPU adds into (8,128);
                # no in-kernel cross-lane/sublane reduce, no masked (1,1) store.
                out_ref[0] = vals.reshape(tile_rows // sub, sub, _LANES).sum(axis=0)

        if needs_mask:
            tid = pl.program_id(0)
            last = pl.num_programs(0) - 1

            @pl.when(tid < last)
            def _():
                store_partial(ll)

            # Only the final tile contains the padded / out-of-bounds tail, so the
            # iota/compare/select runs on that single tile only.
            @pl.when(tid == last)
            def _():
                row = lax.broadcasted_iota(jnp.int32, (tile_rows, _LANES), 0)
                col = lax.broadcasted_iota(jnp.int32, (tile_rows, _LANES), 1)
                grow = row + tid * tile_rows
                full_rows = n_valid // _LANES
                rem = n_valid % _LANES
                valid = (grow < full_rows) | ((grow == full_rows) & (col < rem))
                store_partial(jnp.where(valid, ll, 0.0))
        else:
            store_partial(ll)

    return kernel


def _choose_tiling(rows):
    """Pick (tile_rows, n_tiles): tiles <= _MAX_TILE_ROWS rows, row-count a
    multiple of 8, and an even number of tiles (>= 2) for non-trivial inputs so
    the "parallel" grid splits evenly across the two v7x TensorCores."""
    if rows < 16:
        return rows, 1
    n_tiles = 2 * (-(-rows // (2 * _MAX_TILE_ROWS)))   # even, >= 2
    tile_rows = -(-rows // n_tiles)
    tile_rows = ((tile_rows + 7) // 8) * 8             # (8,128) block constraint
    n_tiles = -(-rows // tile_rows)
    return tile_rows, n_tiles


def loglikelihood_poisson_pallas(k, lam, dt=1.0):
    """Pallas equivalent of LogLikelihoodPoisson(dt).forward(k, lam).

    k, lam: arrays of shape (batch, time, dim), preferably float32 (other dtypes
    are cast to f32 in-kernel).  Returns a float32 scalar.
    """
    assert k.shape == lam.shape and k.ndim >= 2
    batch = k.shape[0]
    n = int(np.prod(k.shape))

    rows = -(-n // _LANES)                              # cdiv
    tile_rows, n_tiles = _choose_tiling(rows)
    sub = 8 if tile_rows % 8 == 0 else tile_rows        # accumulator sublanes
    needs_mask = (n_tiles * tile_rows * _LANES) != n

    # Flatten to a lane-dense 2D slab; pad (only if needed) to whole 128-lane rows.
    k_flat = jnp.reshape(k, (-1,))
    lam_flat = jnp.reshape(lam, (-1,))
    flat_len = rows * _LANES
    if flat_len != n:
        k_flat = jnp.pad(k_flat, (0, flat_len - n))
        lam_flat = jnp.pad(lam_flat, (0, flat_len - n), constant_values=1.0)
    k2 = jnp.reshape(k_flat, (rows, _LANES))
    lam2 = jnp.reshape(lam_flat, (rows, _LANES))

    partials = pl.pallas_call(
        _make_kernel(dt, tile_rows, sub, n, needs_mask),
        out_shape=jax.ShapeDtypeStruct((n_tiles, sub, _LANES), jnp.float32),
        grid_spec=pltpu.PrefetchScalarGridSpec(
            num_scalar_prefetch=0,
            grid=(n_tiles,),
            in_specs=[
                pl.BlockSpec((tile_rows, _LANES), lambda t: (t, 0)),
                pl.BlockSpec((tile_rows, _LANES), lambda t: (t, 0)),
            ],
            out_specs=pl.BlockSpec((1, sub, _LANES), lambda t: (t, 0, 0)),
        ),
        compiler_params=pltpu.CompilerParams(
            dimension_semantics=("parallel",),   # independent per-tile partials
            vmem_limit_bytes=32 * 1024 * 1024,   # headroom; fits v5e/v6e/v7x budgets
        ),
    )(k2, lam2)

    # mean over batch then sum over everything else == global sum / batch
    return jnp.sum(partials) / batch


# ---- reference (plain JAX) for sanity check -------------------------------------
def loglikelihood_poisson_ref(k, lam, dt=1.0):
    lam = lam * dt
    ll = k * jnp.log(lam) - lam - gammaln(k + 1.0)
    return jnp.sum(jnp.mean(ll, axis=0))


if __name__ == "__main__":
    key = jax.random.PRNGKey(0)
    k_key, lam_key = jax.random.split(key)

    B, T, D = 2, 8, 32   # batch x time-steps x input dims
    dt = 0.5

    # Poisson-like integer counts (as float32) and positive intensities.
    counts = jax.random.poisson(k_key, lam=3.0, shape=(B, T, D)).astype(jnp.float32)
    lam = jax.random.uniform(
        lam_key, (B, T, D), dtype=jnp.float32, minval=0.5, maxval=4.0
    )

    out = loglikelihood_poisson_pallas(counts, lam, dt=dt)
    out = jax.block_until_ready(out)

    ref = loglikelihood_poisson_ref(counts, lam, dt=dt)
    assert jnp.allclose(out, ref, rtol=2e-4, atol=1e-2), (out, ref)

    print("KERNEL_OK")
</pallas_src>

<mosaic_0001>
module attributes {stable_mosaic.version = 11 : i64} {
  func.func @kernel(%arg0: i32, %arg1: memref<4x128xf32, #tpu.memory_space<vmem>>, %arg2: memref<4x128xf32, #tpu.memory_space<vmem>>, %arg3: memref<1x4x128xf32, #tpu.memory_space<vmem>>) attributes {dimension_semantics = [#tpu.dimension_semantics<parallel>], iteration_bounds = array<i64: 1>, scalar_prefetch = 0 : i64, scratch_operands = 0 : i64, tpu.core_type = #tpu.core_type<tc>, window_params = [{transform_indices = @transform_0, window_bounds = array<i64: 4, 128>}, {transform_indices = @transform_1, window_bounds = array<i64: 4, 128>}, {transform_indices = @transform_2, window_bounds = array<i64: 1, 4, 128>}]} {
    %c0 = arith.constant 0 : index
    %c0_0 = arith.constant 0 : index
    %0 = vector.load %arg1[%c0, %c0_0] : memref<4x128xf32, #tpu.memory_space<vmem>>, vector<4x128xf32>
    %c0_1 = arith.constant 0 : index
    %c0_2 = arith.constant 0 : index
    %1 = vector.load %arg2[%c0_1, %c0_2] : memref<4x128xf32, #tpu.memory_space<vmem>>, vector<4x128xf32>
    %cst = arith.constant 5.000000e-01 : f32
    %2 = vector.broadcast %cst : f32 to vector<4x128xf32>
    %3 = arith.mulf %1, %2 : vector<4x128xf32>
    %4 = math.log %3 : vector<4x128xf32>
    %5 = arith.mulf %0, %4 : vector<4x128xf32>
    %6 = arith.subf %5, %3 : vector<4x128xf32>
    %cst_3 = arith.constant 2.000000e+00 : f32
    %7 = vector.broadcast %cst_3 : f32 to vector<4x128xf32>
    %8 = arith.addf %0, %7 : vector<4x128xf32>
    %9 = tpu.reciprocal %8 {approx = true} : vector<4x128xf32> -> vector<4x128xf32>
    %10 = arith.mulf %8, %9 : vector<4x128xf32>
    %cst_4 = arith.constant 2.000000e+00 : f32
    %11 = vector.broadcast %cst_4 : f32 to vector<4x128xf32>
    %12 = arith.subf %11, %10 : vector<4x128xf32>
    %13 = arith.mulf %9, %12 : vector<4x128xf32>
    %cst_5 = arith.constant 4.000000e+00 : f32
    %14 = vector.broadcast %cst_5 : f32 to vector<4x128xf32>
    %15 = arith.mulf %14, %13 : vector<4x128xf32>
    %cst_6 = arith.constant 1.000000e+00 : f32
    %16 = vector.broadcast %cst_6 : f32 to vector<4x128xf32>
    %17 = arith.subf %15, %16 : vector<4x128xf32>
    %cst_7 = arith.constant 1.06059815E-4 : f32
    %18 = vector.broadcast %cst_7 : f32 to vector<4x128xf32>
    %19 = arith.mulf %18, %17 : vector<4x128xf32>
    %cst_8 = arith.constant 3.52597795E-4 : f32
    %20 = vector.broadcast %cst_8 : f32 to vector<4x128xf32>
    %21 = arith.addf %19, %20 : vector<4x128xf32>
    %22 = arith.mulf %21, %17 : vector<4x128xf32>
    %cst_9 = arith.constant 0.00102806021 : f32
    %23 = vector.broadcast %cst_9 : f32 to vector<4x128xf32>
    %24 = arith.addf %22, %23 : vector<4x128xf32>
    %25 = arith.mulf %24, %17 : vector<4x128xf32>
    %cst_10 = arith.constant 0.00352903153 : f32
    %26 = vector.broadcast %cst_10 : f32 to vector<4x128xf32>
    %27 = arith.addf %25, %26 : vector<4x128xf32>
    %28 = arith.mulf %27, %17 : vector<4x128xf32>
    %cst_11 = arith.constant 0.0117186839 : f32
    %29 = vector.broadcast %cst_11 : f32 to vector<4x128xf32>
    %30 = arith.addf %28, %29 : vector<4x128xf32>
    %31 = arith.mulf %30, %17 : vector<4x128xf32>
    %cst_12 = arith.constant 0.0366485864 : f32
    %32 = vector.broadcast %cst_12 : f32 to vector<4x128xf32>
    %33 = arith.addf %31, %32 : vector<4x128xf32>
    %34 = arith.mulf %33, %17 : vector<4x128xf32>
    %cst_13 = arith.constant 0.0276778489 : f32
    %35 = vector.broadcast %cst_13 : f32 to vector<4x128xf32>
    %36 = arith.addf %34, %35 : vector<4x128xf32>
    %cst_14 = arith.constant 1.000000e+00 : f32
    %37 = vector.broadcast %cst_14 : f32 to vector<4x128xf32>
    %38 = arith.addf %0, %37 : vector<4x128xf32>
    %cst_15 = arith.constant 5.000000e-01 : f32
    %39 = vector.broadcast %cst_15 : f32 to vector<4x128xf32>
    %40 = arith.addf %0, %39 : vector<4x128xf32>
    %41 = math.log %38 : vector<4x128xf32>
    %42 = arith.mulf %40, %41 : vector<4x128xf32>
    %43 = arith.subf %42, %38 : vector<4x128xf32>
    %cst_16 = arith.constant 0.918938517 : f32
    %44 = vector.broadcast %cst_16 : f32 to vector<4x128xf32>
    %45 = arith.addf %43, %44 : vector<4x128xf32>
    %46 = arith.addf %45, %36 : vector<4x128xf32>
    %47 = arith.subf %6, %46 : vector<4x128xf32>
    %c0_17 = arith.constant 0 : index
    %c0_18 = arith.constant 0 : index
    %c0_19 = arith.constant 0 : index
    %48 = vector.load %arg3[%c0_17, %c0_18, %c0_19] : memref<1x4x128xf32, #tpu.memory_space<vmem>>, vector<1x4x128xf32>
    %49 = vector.shape_cast %48 : vector<1x4x128xf32> to vector<4x128xf32>
    %50 = vector.shape_cast %47 : vector<4x128xf32> to vector<1x4x128xf32>
    tpu.vector_store %arg3[%c0_17, %c0_18, %c0_19], %50 {strides = array<i32>} : memref<1x4x128xf32, #tpu.memory_space<vmem>>, vector<1x4x128xf32>,
    return
  }
  func.func @transform_0(%arg0: i32) -> (i32, i32) {
    %c0_i32 = arith.constant 0 : i32
    %c0_i32_0 = arith.constant 0 : i32
    return %arg0, %c0_i32 : i32, i32
  }
  func.func @transform_1(%arg0: i32) -> (i32, i32) {
    %c0_i32 = arith.constant 0 : i32
    %c0_i32_0 = arith.constant 0 : i32
    return %arg0, %c0_i32 : i32, i32
  }
  func.func @transform_2(%arg0: i32) -> (i32, i32, i32) {
    %c0_i32 = arith.constant 0 : i32
    %c0_i32_0 = arith.constant 0 : i32
    %c0_i32_1 = arith.constant 0 : i32
    return %arg0, %c0_i32, %c0_i32_0 : i32, i32, i32
  }
}

</mosaic_0001>

<llo_original>
// kernel: tpu_custom_call.1
$region0: #{tpu_custom_call.1}
  #allocation0 [shape = 'u32[]', space=smem, size = 0x4, offset = 0x4, fixed_abs, tag = 'smem constant byte address 0x4 - core index']
  #allocation1 [shape = 'u32[144,128]{1,0:T(1,128)}', space=vmem, size = 0x12000, scoped, tag = 'internal scratch']
  %s0 = inlined_call_operand.hbm [shape: f32[4,128], index: 0, kind: input, shape index: {}]
  %s1 = inlined_call_operand.hbm [shape: f32[4,128], index: 1, kind: input, shape index: {}]
  %s2 = inlined_call_operand.hbm [shape: f32[1,4,128], index: 2, kind: output, shape index: {}]
  %s3 = sld [smem:[#allocation0]]
  $region26: #{tpu_custom_call.1} parent=0
    _
  %s5 = ssub.s32 1, %s3
  %s6 = scalar_select 0, %s5, %s3
  $region1: #{tpu_custom_call.1} parent=0
    #allocation2 [shape = 'u8[2048]{0}', space=vmem, size = 0x800, scoped, tag = 'input window, operand 0, single buffered']
    #allocation3 [shape = 's32[1]{0}', space=sflag, size = 0x4, scoped, tag = 'scoped memory for tpu_custom_call.1']
    #allocation4 [shape = 's32[1]{0}', space=sflag, size = 0x4, scoped, tag = 'scoped memory for tpu_custom_call.1']
    #allocation5 [shape = 'u8[2048]{0}', space=vmem, size = 0x800, scoped, tag = 'input window, operand 1, single buffered']
    #allocation6 [shape = 's32[1]{0}', space=sflag, size = 0x4, scoped, tag = 'scoped memory for tpu_custom_call.1']
    #allocation7 [shape = 'u8[2048]{0}', space=vmem, size = 0x800, scoped, tag = 'output window, operand 0, single buffered']
    %7 = vsyncpa [#allocation3], 0
    %8 = vsyncpa [#allocation6], 0
    %9 = vsyncpa [#allocation4], 0
    // Predicated region
    $region2: #{tpu_custom_call.1} parent=1 // pred_check
      _
    $region3: #{tpu_custom_call.1} parent=1 // pred_check_branch
      %11 = sbr.rel (0) target = $region5
    $region4: #{tpu_custom_call.1} parent=1 // pred_region
      %s13 = ssub.s32 64, 64
      %14 = vsyncadd [#allocation3], %s13
      %s16 = sshll.u32 [#allocation2], 4
      %s17 = int_to_ptr.vmem [resolvable:$true] %s16
      %19 = dma.hbm_to_vmem [thread:$0]  %s0, 64, %s17, [#allocation3]
    $region5: #{tpu_custom_call.1} parent=1 // pred_fallthru
      _
    // Predicated region
    $region6: #{tpu_custom_call.1} parent=1 // pred_check
      _
    $region7: #{tpu_custom_call.1} parent=1 // pred_check_branch
      %21 = sbr.rel (0) target = $region9
    $region8: #{tpu_custom_call.1} parent=1 // pred_region
      %s23 = ssub.s32 64, 64
      %24 = vsyncadd [#allocation6], %s23
      %s26 = sshll.u32 [#allocation5], 4
      %s27 = int_to_ptr.vmem [resolvable:$true] %s26
      %29 = dma.hbm_to_vmem [thread:$0]  %s1, 64, %s27, [#allocation6]
    $region9: #{tpu_custom_call.1} parent=1 // pred_fallthru
      _
    // Predicated region
    $region10: #{tpu_custom_call.1} parent=1 // pred_check
      _
    $region11: #{tpu_custom_call.1} parent=1 // pred_check_branch
      %31 = sbr.rel (0) target = $region13
    $region12: #{tpu_custom_call.1} parent=1 // pred_region
      %32 = dma.done [#allocation3], 64
    $region13: #{tpu_custom_call.1} parent=1 // pred_fallthru
      _
    // Predicated region
    $region14: #{tpu_custom_call.1} parent=1 // pred_check
      _
    $region15: #{tpu_custom_call.1} parent=1 // pred_check_branch
      %34 = sbr.rel (0) target = $region17
    $region16: #{tpu_custom_call.1} parent=1 // pred_region
      %35 = dma.done [#allocation6], 64
    $region17: #{tpu_custom_call.1} parent=1 // pred_fallthru
      _
    %v36 = vld [vmem:[#allocation2] sm:$0xf]
    %v37 = vld [vmem:[#allocation5] sm:$0xf]
    %v38 = vmul.f32 %v37, 0.5
    %v39 = vlog2.pop %v38
    %v40 = vmul.f32 %v39, 0.6931472
    %v41 = vmul.f32 %v36, %v40
    %v42 = vsub.f32 %v41, %v38
    %v43 = vadd.f32 %v36, 2.0
    %v44 = vrcp.pop %v43
    %v45 = vmul.f32 %v43, %v44
    %v46 = vsub.f32 2.0, %v45
    %v47 = vmul.f32 %v44, %v46
    %v48 = vmul.f32 %v47, 4.0
    %v49 = vsub.f32 %v48, 1.0
    %v50 = vmul.f32 %v49, 0.000106059815
    %v51 = vadd.f32 %v50, 0.0003525978
    %v52 = vmul.f32 %v51, %v49
    %v53 = vadd.f32 %v52, 0.0010280602
    %v54 = vmul.f32 %v53, %v49
    %v55 = vadd.f32 %v54, 0.0035290315
    %v56 = vmul.f32 %v55, %v49
    %v57 = vadd.f32 %v56, 0.011718684
    %v58 = vmul.f32 %v57, %v49
    %v59 = vadd.f32 %v58, 0.036648586
    %v60 = vmul.f32 %v59, %v49
    %v61 = vadd.f32 %v60, 0.027677849
    %v62 = vadd.f32 %v36, 1.0
    %v63 = vadd.f32 %v36, 0.5
    %v64 = vlog2.pop %v62
    %v65 = vmul.f32 %v64, 0.6931472
    %v66 = vmul.f32 %v63, %v65
    %v67 = vsub.f32 %v66, %v62
    %v68 = vadd.f32 %v67, 0.9189385
    %v69 = vadd.f32 %v68, %v61
    %v70 = vsub.f32 %v42, %v69
    %71 = vst [vmem:[#allocation7] sm:$0xf] %v70
    // Predicated region
    $region18: #{tpu_custom_call.1} parent=1 // pred_check
      _
    $region19: #{tpu_custom_call.1} parent=1 // pred_check_branch
      %73 = sbr.rel (0) target = $region21
    $region20: #{tpu_custom_call.1} parent=1 // pred_region
      %s75 = ssub.s32 64, 64
      %76 = vsyncadd [#allocation4], %s75
      %s78 = sshll.u32 [#allocation7], 4
      %s79 = int_to_ptr.vmem [resolvable:$true] %s78
      %81 = dma.vmem_to_hbm [thread:$0]  %s79, 64, %s2, [#allocation4]
    $region21: #{tpu_custom_call.1} parent=1 // pred_fallthru
      _
    // Predicated region
    $region22: #{tpu_custom_call.1} parent=1 // pred_check
      _
    $region23: #{tpu_custom_call.1} parent=1 // pred_check_branch
      %83 = sbr.rel (0) target = $region25
    $region24: #{tpu_custom_call.1} parent=1 // pred_region
      %84 = dma.done [#allocation4], 64
    $region25: #{tpu_custom_call.1} parent=1 // pred_fallthru
      _
    %85 = vsyncpa [#allocation3], 1
    %86 = vsyncpa [#allocation6], 1
    %87 = vsyncpa [#allocation4], 1

</llo_original>
